<compile_context>
chip_gen: v6e
topology: v6e:2x2x1
jax: 0.10.0
libtpu: 0.0.40
codegen_flags: <defaults>
</compile_context>

<pallas_src>
import functools
import math

import jax
import jax.numpy as jnp
from jax import lax
from jax.experimental import pallas as pl
from jax.experimental.pallas import tpu as pltpu


# ---------------------------------------------------------------------------
# Tiled linear: out = x @ w + b   (w is stored as (in_features, out_features))
# ---------------------------------------------------------------------------
def _linear_kernel(x_ref, w_ref, b_ref, o_ref, acc_ref):
    k = pl.program_id(2)

    @pl.when(k == 0)
    def _():
        acc_ref[...] = jnp.zeros(acc_ref.shape, jnp.float32)

    acc_ref[...] += jnp.dot(
        x_ref[...], w_ref[...], preferred_element_type=jnp.float32
    )

    @pl.when(k == pl.num_programs(2) - 1)
    def _():
        o_ref[...] = (acc_ref[...] + b_ref[...]).astype(o_ref.dtype)


def _pick_tile(dim, candidates):
    for c in candidates:
        if dim % c == 0:
            return c
    return dim  # fall back to the full dimension (always a legal block)


def linear(x, w, b):
    """x: (M, K) f32, w: (K, N) f32, b: (1, N) f32 -> (M, N) f32."""
    M, K = x.shape
    K2, N = w.shape
    assert K == K2 and b.shape == (1, N)
    tm = _pick_tile(M, (256, 128, 64, 32, 16, 8))
    tn = _pick_tile(N, (256, 128))
    tk = _pick_tile(K, (512, 256, 128))
    return pl.pallas_call(
        _linear_kernel,
        out_shape=jax.ShapeDtypeStruct((M, N), x.dtype),
        grid=(M // tm, N // tn, K // tk),
        in_specs=[
            pl.BlockSpec((tm, tk), lambda i, j, k: (i, k)),
            pl.BlockSpec((tk, tn), lambda i, j, k: (k, j)),
            pl.BlockSpec((1, tn), lambda i, j, k: (0, j)),
        ],
        out_specs=pl.BlockSpec((tm, tn), lambda i, j, k: (i, j)),
        scratch_shapes=[pltpu.VMEM((tm, tn), jnp.float32)],
        compiler_params=pltpu.CompilerParams(
            dimension_semantics=("parallel", "parallel", "arbitrary")
        ),
    )(x, w, b)


# ---------------------------------------------------------------------------
# Scaled dot-product attention (flash-style online softmax), per (batch*head)
# ---------------------------------------------------------------------------
def _attn_kernel(q_ref, k_ref, v_ref, o_ref, m_sc, l_sc, acc_sc, *, scale):
    kv = pl.program_id(2)

    @pl.when(kv == 0)
    def _():
        m_sc[...] = jnp.full(m_sc.shape, -jnp.inf, jnp.float32)
        l_sc[...] = jnp.zeros(l_sc.shape, jnp.float32)
        acc_sc[...] = jnp.zeros(acc_sc.shape, jnp.float32)

    q = q_ref[0]  # (tq, depth)
    k = k_ref[0]  # (tkv, depth)
    v = v_ref[0]  # (tkv, depth)

    # s[i, j] = <q_i, k_j> * scale   (contract the depth axis of both operands)
    s = lax.dot_general(
        q, k, (((1,), (1,)), ((), ())), preferred_element_type=jnp.float32
    ) * scale                                            # (tq, tkv)

    m_prev = m_sc[...]
    m_new = jnp.maximum(m_prev, s.max(axis=-1, keepdims=True))
    alpha = jnp.exp(m_prev - m_new)
    p = jnp.exp(s - m_new)
    l_sc[...] = alpha * l_sc[...] + p.sum(axis=-1, keepdims=True)
    acc_sc[...] = alpha * acc_sc[...] + jnp.dot(
        p.astype(v.dtype), v, preferred_element_type=jnp.float32
    )
    m_sc[...] = m_new

    @pl.when(kv == pl.num_programs(2) - 1)
    def _():
        o_ref[0] = (acc_sc[...] / l_sc[...]).astype(o_ref.dtype)


def attention(q, k, v, *, scale):
    """q: (BH, Sq, depth), k/v: (BH, Skv, depth) -> (BH, Sq, depth)."""
    BH, Sq, depth = q.shape
    _, Skv, _ = k.shape
    tq = _pick_tile(Sq, (256, 128, 64, 32, 16, 8))
    tkv = _pick_tile(Skv, (256, 128, 64, 32, 16, 8))
    kern = functools.partial(_attn_kernel, scale=scale)
    return pl.pallas_call(
        kern,
        out_shape=jax.ShapeDtypeStruct((BH, Sq, depth), q.dtype),
        grid=(BH, Sq // tq, Skv // tkv),
        in_specs=[
            pl.BlockSpec((1, tq, depth), lambda b, qi, ki: (b, qi, 0)),
            pl.BlockSpec((1, tkv, depth), lambda b, qi, ki: (b, ki, 0)),
            pl.BlockSpec((1, tkv, depth), lambda b, qi, ki: (b, ki, 0)),
        ],
        out_specs=pl.BlockSpec((1, tq, depth), lambda b, qi, ki: (b, qi, 0)),
        scratch_shapes=[
            pltpu.VMEM((tq, 1), jnp.float32),      # running max
            pltpu.VMEM((tq, 1), jnp.float32),      # running denom
            pltpu.VMEM((tq, depth), jnp.float32),  # running numerator
        ],
        compiler_params=pltpu.CompilerParams(
            dimension_semantics=("parallel", "parallel", "arbitrary")
        ),
    )(q, k, v)


# ---------------------------------------------------------------------------
# Full MultiHeadAttention forward
# ---------------------------------------------------------------------------
def multi_head_attention(query, key, value, params, *, num_heads, mask=None):
    # TODO(synk): boolean attention-mask path (masked_fill with -1e9) not implemented;
    #             only the mask=None path of the reference module is supported.
    assert mask is None
    B, Sq, D = query.shape
    _, Skv, _ = key.shape
    assert D % num_heads == 0
    depth = D // num_heads
    scale = 1.0 / math.sqrt(depth)

    q = linear(query.reshape(B * Sq, D), params["wq"], params["bq"])
    k = linear(key.reshape(B * Skv, D), params["wk"], params["bk"])
    v = linear(value.reshape(B * Skv, D), params["wv"], params["bv"])

    # split heads: (B*S, D) -> (B*H, S, depth)    [wrapper-side layout plumbing]
    def split(x, S):
        return (
            x.reshape(B, S, num_heads, depth)
            .transpose(0, 2, 1, 3)
            .reshape(B * num_heads, S, depth)
        )

    ctx = attention(split(q, Sq), split(k, Skv), split(v, Skv), scale=scale)

    # merge heads: (B*H, Sq, depth) -> (B*Sq, D)
    ctx = (
        ctx.reshape(B, num_heads, Sq, depth)
        .transpose(0, 2, 1, 3)
        .reshape(B * Sq, D)
    )

    out = linear(ctx, params["wo"], params["bo"])
    return out.reshape(B, Sq, D)


if __name__ == "__main__":
    # Small shapes consistent with the module: d_model=512, num_heads=8
    B, S = 2, 8
    d_model, num_heads = 512, 8

    root = jax.random.PRNGKey(0)
    keys = jax.random.split(root, 11)
    bound = 1.0 / math.sqrt(d_model)  # nn.Linear default init range

    def w_init(k):  # stored as (in_features, out_features) == W.T
        return jax.random.uniform(k, (d_model, d_model), jnp.float32, -bound, bound)

    def b_init(k):
        return jax.random.uniform(k, (1, d_model), jnp.float32, -bound, bound)

    params = {
        "wq": w_init(keys[0]), "bq": b_init(keys[1]),
        "wk": w_init(keys[2]), "bk": b_init(keys[3]),
        "wv": w_init(keys[4]), "bv": b_init(keys[5]),
        "wo": w_init(keys[6]), "bo": b_init(keys[7]),
    }

    query = jax.random.normal(keys[8], (B, S, d_model), jnp.float32)
    key_in = jax.random.normal(keys[9], (B, S, d_model), jnp.float32)
    value = jax.random.normal(keys[10], (B, S, d_model), jnp.float32)

    out = multi_head_attention(query, key_in, value, params, num_heads=num_heads)
    out = jax.block_until_ready(out)

    # Pure-JAX reference (mirrors the PyTorch forward with mask=None)
    def ref_mha(q_in, k_in, v_in):
        depth = d_model // num_heads
        q = q_in @ params["wq"] + params["bq"]
        k = k_in @ params["wk"] + params["bk"]
        v = v_in @ params["wv"] + params["bv"]

        def split(x):
            return x.reshape(B, S, num_heads, depth).transpose(0, 2, 1, 3)

        q, k, v = split(q), split(k), split(v)
        logits = jnp.einsum("bhqd,bhkd->bhqk", q, k) / math.sqrt(depth)
        w = jax.nn.softmax(logits, axis=-1)
        o = jnp.einsum("bhqk,bhkd->bhqd", w, v)
        o = o.transpose(0, 2, 1, 3).reshape(B, S, d_model)
        return o @ params["wo"] + params["bo"]

    ref = ref_mha(query, key_in, value)
    assert out.shape == (B, S, d_model)
    max_err = jnp.max(jnp.abs(out - ref))
    assert jnp.allclose(out, ref, atol=5e-2, rtol=5e-2), f"mismatch, max err {max_err}"

    print("KERNEL_OK")
</pallas_src>

<mosaic_0001>
module attributes {stable_mosaic.version = 11 : i64} {
  func.func @_linear_kernel(%arg0: i32, %arg1: i32, %arg2: i32, %arg3: memref<16x512xf32, #tpu.memory_space<vmem>>, %arg4: memref<512x256xf32, #tpu.memory_space<vmem>>, %arg5: memref<1x256xf32, #tpu.memory_space<vmem>>, %arg6: memref<16x256xf32, #tpu.memory_space<vmem>>, %arg7: memref<16x256xf32, #tpu.memory_space<vmem>>) attributes {dimension_semantics = [#tpu.dimension_semantics<parallel>, #tpu.dimension_semantics<parallel>, #tpu.dimension_semantics<arbitrary>], iteration_bounds = array<i64: 1, 2, 1>, scalar_prefetch = 0 : i64, scratch_operands = 1 : i64, tpu.core_type = #tpu.core_type<tc>, window_params = [{transform_indices = @transform_0, window_bounds = array<i64: 16, 512>}, {transform_indices = @transform_1, window_bounds = array<i64: 512, 256>}, {transform_indices = @transform_2, window_bounds = array<i64: 1, 256>}, {transform_indices = @transform_3, window_bounds = array<i64: 16, 256>}]} {
    %c0_i32 = arith.constant 0 : i32
    %0 = arith.cmpi eq, %arg2, %c0_i32 : i32
    %1 = arith.extui %0 : i1 to i32
    %c0_i32_0 = arith.constant 0 : i32
    %2 = arith.cmpi ne, %1, %c0_i32_0 : i32
    scf.if %2 {
      %cst_10 = arith.constant 0.000000e+00 : f32
      %12 = vector.broadcast %cst_10 : f32 to vector<16x256xf32>
      %c0_11 = arith.constant 0 : index
      %c0_12 = arith.constant 0 : index
      %13 = vector.load %arg7[%c0_11, %c0_12] : memref<16x256xf32, #tpu.memory_space<vmem>>, vector<16x256xf32>
      tpu.vector_store %arg7[%c0_11, %c0_12], %12 {strides = array<i32>} : memref<16x256xf32, #tpu.memory_space<vmem>>, vector<16x256xf32>,
    } else {
    }
    %c0 = arith.constant 0 : index
    %c0_1 = arith.constant 0 : index
    %3 = vector.load %arg7[%c0, %c0_1] : memref<16x256xf32, #tpu.memory_space<vmem>>, vector<16x256xf32>
    %c0_2 = arith.constant 0 : index
    %c0_3 = arith.constant 0 : index
    %4 = vector.load %arg3[%c0_2, %c0_3] : memref<16x512xf32, #tpu.memory_space<vmem>>, vector<16x512xf32>
    %c0_4 = arith.constant 0 : index
    %c0_5 = arith.constant 0 : index
    %5 = vector.load %arg4[%c0_4, %c0_5] : memref<512x256xf32, #tpu.memory_space<vmem>>, vector<512x256xf32>
    %cst = arith.constant dense<0.000000e+00> : vector<16x256xf32>
    %6 = tpu.matmul %4, %5, %cst {dimension_numbers = #tpu.dot_dimension_numbers<[1], [0], [0], [1], [0, 0, 1, 1], [], []>} : vector<16x512xf32>, vector<512x256xf32>, vector<16x256xf32> -> vector<16x256xf32>
    %7 = arith.addf %3, %6 : vector<16x256xf32>
    %c0_6 = arith.constant 0 : index
    %c0_7 = arith.constant 0 : index
    %8 = vector.load %arg7[%c0_6, %c0_7] : memref<16x256xf32, #tpu.memory_space<vmem>>, vector<16x256xf32>
    tpu.vector_store %arg7[%c0_6, %c0_7], %7 {strides = array<i32>} : memref<16x256xf32, #tpu.memory_space<vmem>>, vector<16x256xf32>,
    %c0_i32_8 = arith.constant 0 : i32
    %9 = arith.cmpi eq, %arg2, %c0_i32_8 : i32
    %10 = arith.extui %9 : i1 to i32
    %c0_i32_9 = arith.constant 0 : i32
    %11 = arith.cmpi ne, %10, %c0_i32_9 : i32
    scf.if %11 {
      %c0_10 = arith.constant 0 : index
      %c0_11 = arith.constant 0 : index
      %12 = vector.load %arg7[%c0_10, %c0_11] : memref<16x256xf32, #tpu.memory_space<vmem>>, vector<16x256xf32>
      %c0_12 = arith.constant 0 : index
      %c0_13 = arith.constant 0 : index
      %13 = vector.load %arg5[%c0_12, %c0_13] : memref<1x256xf32, #tpu.memory_space<vmem>>, vector<1x256xf32>
      %14 = vector.broadcast %13 : vector<1x256xf32> to vector<16x256xf32>
      %15 = arith.addf %12, %14 : vector<16x256xf32>
      %c0_14 = arith.constant 0 : index
      %c0_15 = arith.constant 0 : index
      %16 = vector.load %arg6[%c0_14, %c0_15] : memref<16x256xf32, #tpu.memory_space<vmem>>, vector<16x256xf32>
      tpu.vector_store %arg6[%c0_14, %c0_15], %15 {strides = array<i32>} : memref<16x256xf32, #tpu.memory_space<vmem>>, vector<16x256xf32>,
    } else {
    }
    return
  }
  func.func @transform_0(%arg0: i32, %arg1: i32, %arg2: i32) -> (i32, i32) {
    %c0_i32 = arith.constant 0 : i32
    return %arg0, %arg2 : i32, i32
  }
  func.func @transform_1(%arg0: i32, %arg1: i32, %arg2: i32) -> (i32, i32) {
    %c0_i32 = arith.constant 0 : i32
    return %arg2, %arg1 : i32, i32
  }
  func.func @transform_2(%arg0: i32, %arg1: i32, %arg2: i32) -> (i32, i32) {
    %c0_i32 = arith.constant 0 : i32
    %c0_i32_0 = arith.constant 0 : i32
    return %c0_i32, %arg1 : i32, i32
  }
  func.func @transform_3(%arg0: i32, %arg1: i32, %arg2: i32) -> (i32, i32) {
    %c0_i32 = arith.constant 0 : i32
    return %arg0, %arg1 : i32, i32
  }
}

</mosaic_0001>

<llo_original>
// kernel: tpu_custom_call.1
$region0: #{tpu_custom_call.1}
  #allocation0 [shape = 'u32[]', space=smem, size = 0x4, offset = 0x4, fixed_abs, tag = 'smem constant byte address 0x4 - core index']
  #allocation1 [shape = 'u32[144,128]{1,0:T(1,128)}', space=vmem, size = 0x12000, scoped, tag = 'internal scratch']
  #allocation2 [shape = 'f32[16,256]{1,0:T(8,128)}', space=vmem, size = 0x4000, scoped, tag = 'scratch operand']
  %s0 = inlined_call_operand.hbm [shape: f32[16,512], index: 0, kind: input, shape index: {}]
  %s1 = inlined_call_operand.hbm [shape: f32[512,512], index: 1, kind: input, shape index: {}]
  %s2 = inlined_call_operand.hbm [shape: f32[1,512], index: 2, kind: input, shape index: {}]
  %s3 = inlined_call_operand.hbm [shape: f32[16,512], index: 3, kind: output, shape index: {}]
  %s4 = sld [smem:[#allocation0]]
  $region65: #{tpu_custom_call.1} parent=0
    _
  %s6 = ssub.s32 1, %s4
  %s7 = scalar_select 0, %s6, %s4
  $region1: #{tpu_custom_call.1} parent=0
    #allocation3 [shape = 'u8[32768]{0}', space=vmem, size = 0x8000, scoped, tag = 'input window, operand 0, single buffered']
    #allocation4 [shape = 's32[2]{0}', space=sflag, size = 0x8, scoped, tag = 'scoped memory for tpu_custom_call.1']
    #allocation5 [shape = 's32[2]{0}', space=sflag, size = 0x8, scoped, tag = 'scoped memory for tpu_custom_call.1']
    #allocation6 [shape = 'u8[1048576]{0}', space=vmem, size = 0x100000, scoped, tag = 'input window, operand 1']
    #allocation7 [shape = 's32[2]{0}', space=sflag, size = 0x8, scoped, tag = 'scoped memory for tpu_custom_call.1']
    #allocation8 [shape = 'u8[2048]{0}', space=vmem, size = 0x800, scoped, tag = 'input window, operand 2']
    #allocation9 [shape = 'u8[32768]{0}', space=vmem, size = 0x8000, scoped, tag = 'output window, operand 0']
    %8 = vsyncpa [#allocation4], 0
    %9 = vsyncpa [#allocation7], 0
    %s10 = scalar_lea.sflag [#allocation7], 1
    %11 = vsyncpa %s10, 0
    %12 = vsyncpa [#allocation5], 0
    %s13 = scalar_lea.sflag [#allocation5], 1
    %14 = vsyncpa %s13, 0
    loop: start=0, step=1, limit=4
    $region2: #{tpu_custom_call.1} parent=1 // loop_pre_header
      _
    $region3: #{tpu_custom_call.1} parent=1 // loop_header
      %s16 = sphi 0, %s20
      %p17 = scmp.ge.s32.totalorder %s16, 4
      %s23 = sphi 0, %s42
      %s24 = sphi 0, %s38
      %s25 = sphi 0, %s34
      %s26 = sphi 0, %s23
      %s27 = sphi 0, %s24
      %s28 = sphi 0, %s25
      %s29 = sphi 0, %s26
      %s30 = sphi 0, %s27
      %s31 = sphi 0, %s28
      %s47 = sphi 0, %s49
      %s50 = sphi 0, %s47
      %s51 = sphi 0, %s50
      %s67 = sphi 0, %s51
      %s75 = sphi 0, %s77
      %s78 = sphi 0, %s75
      %s79 = sphi 0, %s78
      %s95 = sphi 0, %s79
      %s101 = sphi 0, %s103
      %s104 = sphi 0, %s101
      %s105 = sphi 0, %s104
      %s121 = sphi 0, %s105
      %s129 = sphi 0, %s131
      %s132 = sphi 0, %s129
      %s133 = sphi 0, %s132
      %s149 = sphi 0, %s133
    $region4: #{tpu_custom_call.1} parent=1 // loop_header_branch
      %19 = sbr.rel (%p17) target = $region8
    $region5: #{tpu_custom_call.1} parent=1 // loop_body
      %s21 = ssub.s32 %s16, 1
      %s22 = ssub.s32 %s16, 2
      %s32 = sadd.s32 1, %s25
      %p33 = scmp.ge.s32.totalorder %s32, 1
      %s34 = scalar_select %p33, 0, %s32
      %s35 = sadd.s32 1, %s24
      %s36 = scalar_select %p33, %s35, %s24
      %p37 = scmp.ge.s32.totalorder %s36, 2
      %s38 = scalar_select %p37, 0, %s36
      %s39 = sadd.s32 1, %s23
      %s40 = scalar_select %p37, %s39, %s23
      %p41 = scmp.ge.s32.totalorder %s40, 1
      %s42 = scalar_select %p41, 0, %s40
      %s43 = ssub.s32 %s23, %s42
      %s44 = ssub.s32 %s25, %s34
      %s45 = sor.u32 %s43, %s44
      %p46 = scmp.eq.s32.totalorder %s45, 0
      %s48 = sadd.s32 %s47, 1
      %s49 = scalar_select %p46, %s47, %s48
      %p52 = pneg %p46
      %p53 = scmp.eq.s32.totalorder %s16, 1
      %p54 = por %p52, %p53
      %p55 = scmp.ne.s32.totalorder %s47, %s50
      %p56 = scmp.eq.s32.totalorder %s16, 0
      %p57 = por %p55, %p56
      %p58 = scmp.ne.s32.totalorder %s47, %s50
      %p59 = scmp.eq.s32.totalorder %s21, 1
      %p60 = por %p58, %p59
      %p61 = scmp.ne.s32.totalorder %s50, %s51
      %p62 = scmp.eq.s32.totalorder %s21, 0
      %p63 = por %p61, %p62
      %p64 = scmp.ne.s32.totalorder %s50, %s51
      %p65 = scmp.eq.s32.totalorder %s22, 1
      %p66 = por %p64, %p65
      %p68 = scmp.ne.s32.totalorder %s51, %s67
      %p69 = scmp.eq.s32.totalorder %s22, 0
      %p70 = por %p68, %p69
      %s71 = ssub.s32 %s25, %s34
      %s72 = ssub.s32 %s24, %s38
      %s73 = sor.u32 %s71, %s72
      %p74 = scmp.eq.s32.totalorder %s73, 0
      %s76 = sadd.s32 %s75, 1
      %s77 = scalar_select %p74, %s75, %s76
      %p80 = pneg %p74
      %p81 = scmp.eq.s32.totalorder %s16, 1
      %p82 = por %p80, %p81
      %p83 = scmp.ne.s32.totalorder %s75, %s78
      %p84 = scmp.eq.s32.totalorder %s16, 0
      %p85 = por %p83, %p84
      %p86 = scmp.ne.s32.totalorder %s75, %s78
      %p87 = scmp.eq.s32.totalorder %s21, 1
      %p88 = por %p86, %p87
      %p89 = scmp.ne.s32.totalorder %s78, %s79
      %p90 = scmp.eq.s32.totalorder %s21, 0
      %p91 = por %p89, %p90
      %p92 = scmp.ne.s32.totalorder %s78, %s79
      %p93 = scmp.eq.s32.totalorder %s22, 1
      %p94 = por %p92, %p93
      %p96 = scmp.ne.s32.totalorder %s79, %s95
      %p97 = scmp.eq.s32.totalorder %s22, 0
      %p98 = por %p96, %p97
      %s99 = ssub.s32 %s24, %s38
      %p100 = scmp.eq.s32.totalorder %s99, 0
      %s102 = sadd.s32 %s101, 1
      %s103 = scalar_select %p100, %s101, %s102
      %p106 = pneg %p100
      %p107 = scmp.eq.s32.totalorder %s16, 1
      %p108 = por %p106, %p107
      %p109 = scmp.ne.s32.totalorder %s101, %s104
      %p110 = scmp.eq.s32.totalorder %s16, 0
      %p111 = por %p109, %p110
      %p112 = scmp.ne.s32.totalorder %s101, %s104
      %p113 = scmp.eq.s32.totalorder %s21, 1
      %p114 = por %p112, %p113
      %p115 = scmp.ne.s32.totalorder %s104, %s105
      %p116 = scmp.eq.s32.totalorder %s21, 0
      %p117 = por %p115, %p116
      %p118 = scmp.ne.s32.totalorder %s104, %s105
      %p119 = scmp.eq.s32.totalorder %s22, 1
      %p120 = por %p118, %p119
      %p122 = scmp.ne.s32.totalorder %s105, %s121
      %p123 = scmp.eq.s32.totalorder %s22, 0
      %p124 = por %p122, %p123
      %s125 = ssub.s32 %s23, %s42
      %s126 = ssub.s32 %s24, %s38
      %s127 = sor.u32 %s125, %s126
      %p128 = scmp.eq.s32.totalorder %s127, 0
      %s130 = sadd.s32 %s129, 1
      %s131 = scalar_select %p128, %s129, %s130
      %p134 = pneg %p128
      %p135 = scmp.eq.s32.totalorder %s16, 1
      %p136 = por %p134, %p135
      %p137 = scmp.ne.s32.totalorder %s129, %s132
      %p138 = scmp.eq.s32.totalorder %s16, 0
      %p139 = por %p137, %p138
      %p140 = scmp.ne.s32.totalorder %s129, %s132
      %p141 = scmp.eq.s32.totalorder %s21, 1
      %p142 = por %p140, %p141
      %p143 = scmp.ne.s32.totalorder %s132, %s133
      %p144 = scmp.eq.s32.totalorder %s21, 0
      %p145 = por %p143, %p144
      %p146 = scmp.ne.s32.totalorder %s132, %s133
      %p147 = scmp.eq.s32.totalorder %s22, 1
      %p148 = por %p146, %p147
      %p150 = scmp.ne.s32.totalorder %s133, %s149
      %p151 = scmp.eq.s32.totalorder %s22, 0
      %p152 = por %p150, %p151
      %p153 = scmp.le.s32.totalorder 1, %s16
      %p154 = scmp.lt.s32.totalorder %s16, 3
      %p155 = pnand %p153, %p154
      %p156 = pneg %p155
      // Predicated region
      $region9: #{tpu_custom_call.1} parent=5 // pred_check
        _
      $region10: #{tpu_custom_call.1} parent=5 // pred_check_branch
        %158 = sbr.rel (%p155) target = $region12
      $region11: #{tpu_custom_call.1} parent=5 // pred_region
        %s159 = ssub.s32 %s16, 1
        // Predicated region
        $region13: #{tpu_custom_call.1} parent=11 // pred_check
          %p160 = pneg %p63
        $region14: #{tpu_custom_call.1} parent=11 // pred_check_branch
          %162 = sbr.rel (%p160) target = $region16
        $region15: #{tpu_custom_call.1} parent=11 // pred_region
          %s163 = smul.u32 2, %s26
          %s164 = smul.u32 4, %s28
          %s166 = ssub.s32 1024, 1024
          %167 = vsyncadd [#allocation4], %s166
          %s168 = smul.addr %s163, 4
          %s169 = sadd.s32 %s164, %s168
          %s170 = smul.addr %s169, 128
          %s171 = scalar_lea.hbm %s0, %s170
          %s172 = sshll.u32 [#allocation3], 4
          %s173 = int_to_ptr.vmem [resolvable:$true] %s172
          %178 = dma.hbm_to_vmem [thread:$0]  %s171, 1024, %s173, [#allocation4], 512, 512, 32
        $region16: #{tpu_custom_call.1} parent=11 // pred_fallthru
          _
      $region12: #{tpu_custom_call.1} parent=5 // pred_fallthru
        _
      %p179 = scmp.lt.s32.totalorder %s16, 2
      // Predicated region
      $region17: #{tpu_custom_call.1} parent=5 // pred_check
        %p180 = pneg %p179
      $region18: #{tpu_custom_call.1} parent=5 // pred_check_branch
        %182 = sbr.rel (%p180) target = $region20
      $region19: #{tpu_custom_call.1} parent=5 // pred_region
        // Predicated region
        $region21: #{tpu_custom_call.1} parent=19 // pred_check
          %p183 = pneg %p85
        $region22: #{tpu_custom_call.1} parent=19 // pred_check_branch
          %185 = sbr.rel (%p183) target = $region24
        $region23: #{tpu_custom_call.1} parent=19 // pred_region
          %s186 = sand.u32 %s16, 1
          %s187 = scalar_lea.sflag [#allocation7], %s186
          %s188 = sand.u32 %s75, 1
          %s189 = smul.addr %s188, 1024
          %s190 = scalar_lea.vmem [#allocation6], %s189
          %s191 = smul.u32 64, %s25
          %s192 = smul.u32 2, %s24
          %s194 = ssub.s32 16384, 16384
          %195 = vsyncadd %s187, %s194
          %s196 = smul.addr %s191, 4
          %s197 = sadd.s32 %s192, %s196
          %s198 = smul.addr %s197, 128
          %s199 = scalar_lea.hbm %s1, %s198
          %s200 = sshll.u32 %s190, 4
          %s201 = int_to_ptr.vmem [resolvable:$true] %s200
          %206 = dma.hbm_to_vmem [thread:$0]  %s199, 16384, %s201, %s187, 512, 256, 16
        $region24: #{tpu_custom_call.1} parent=19 // pred_fallthru
          _
        // Predicated region
        $region25: #{tpu_custom_call.1} parent=19 // pred_check
          %p207 = pneg %p111
        $region26: #{tpu_custom_call.1} parent=19 // pred_check_branch
          %209 = sbr.rel (%p207) target = $region28
        $region27: #{tpu_custom_call.1} parent=19 // pred_region
          %s210 = sand.u32 %s16, 1
          %s211 = scalar_lea.sflag [#allocation7], %s210
          %s212 = sand.u32 %s101, 1
          %s213 = smul.addr %s212, 2
          %s214 = scalar_lea.vmem [#allocation8], %s213
          %s215 = smul.u32 2, %s24
          %s217 = ssub.s32 32, 32
          %218 = vsyncadd %s211, %s217
          %s219 = smul.addr %s215, 16
          %s220 = scalar_lea.hbm %s2, %s219
          %s222 = sshll.u32 %s214, 4
          %s223 = int_to_ptr.vmem [resolvable:$true] %s222
          %225 = dma.hbm_to_vmem [thread:$0]  %s220, 32, %s223, %s211
        $region28: #{tpu_custom_call.1} parent=19 // pred_fallthru
          _
      $region20: #{tpu_custom_call.1} parent=5 // pred_fallthru
        _
      %p226 = scmp.le.s32.totalorder 1, %s16
      %p227 = scmp.lt.s32.totalorder %s16, 3
      %p228 = pnand %p226, %p227
      %p229 = pneg %p228
      // Predicated region
      $region29: #{tpu_custom_call.1} parent=5 // pred_check
        _
      $region30: #{tpu_custom_call.1} parent=5 // pred_check_branch
        %231 = sbr.rel (%p228) target = $region32
      $region31: #{tpu_custom_call.1} parent=5 // pred_region
        %s232 = ssub.s32 %s16, 1
        // Predicated region
        $region33: #{tpu_custom_call.1} parent=31 // pred_check
          %p233 = pneg %p63
        $region34: #{tpu_custom_call.1} parent=31 // pred_check_branch
          %235 = sbr.rel (%p233) target = $region36
        $region35: #{tpu_custom_call.1} parent=31 // pred_region
          %236 = dma.done [#allocation4], 1024
        $region36: #{tpu_custom_call.1} parent=31 // pred_fallthru
          _
        %s237 = sand.u32 %s21, 1
        %s238 = scalar_lea.sflag [#allocation7], %s237
        %s239 = sand.u32 %s78, 1
        %s240 = smul.addr %s239, 1024
        %s241 = scalar_lea.vmem [#allocation6], %s240
        // Predicated region
        $region37: #{tpu_custom_call.1} parent=31 // pred_check
          %p242 = pneg %p91
        $region38: #{tpu_custom_call.1} parent=31 // pred_check_branch
          %244 = sbr.rel (%p242) target = $region40
        $region39: #{tpu_custom_call.1} parent=31 // pred_region
          %245 = dma.done %s238, 16384
        $region40: #{tpu_custom_call.1} parent=31 // pred_fallthru
          _
        %s246 = sand.u32 %s21, 1
        %s247 = scalar_lea.sflag [#allocation7], %s246
        %s248 = sand.u32 %s104, 1
        %s249 = smul.addr %s248, 2
        %s250 = scalar_lea.vmem [#allocation8], %s249
        // Predicated region
        $region41: #{tpu_custom_call.1} parent=31 // pred_check
          %p251 = pneg %p117
        $region42: #{tpu_custom_call.1} parent=31 // pred_check_branch
          %253 = sbr.rel (%p251) target = $region44
        $region43: #{tpu_custom_call.1} parent=31 // pred_region
          %254 = dma.done %s247, 32
        $region44: #{tpu_custom_call.1} parent=31 // pred_fallthru
          _
        %p255 = pneg %p63
        %p256 = pneg %p60
        %s257 = sand.u32 %s21, 1
        %s258 = scalar_lea.sflag [#allocation7], %s257
        %s259 = sand.u32 %s78, 1
        %s260 = smul.addr %s259, 1024
        %s261 = scalar_lea.vmem [#allocation6], %s260
        %p262 = pneg %p91
        %p263 = pneg %p88
        %s264 = sand.u32 %s21, 1
        %s265 = scalar_lea.sflag [#allocation7], %s264
        %s266 = sand.u32 %s104, 1
        %s267 = smul.addr %s266, 2
        %s268 = scalar_lea.vmem [#allocation8], %s267
        %p269 = pneg %p117
        %p270 = pneg %p114
        %p271 = pneg %p145
        %p272 = pneg %p142
        %s273 = sand.u32 %s132, 1
        %s274 = scalar_lea.sflag [#allocation5], %s273
        %s275 = sand.u32 %s132, 1
        %s276 = smul.addr %s275, 32
        %s277 = scalar_lea.vmem [#allocation9], %s276
        %s278 = smul.u32 2, %s26
        %s279 = smul.u32 4, %s28
        %s280 = smul.u32 64, %s28
        %s281 = smul.u32 2, %s27
        %s282 = smul.u32 2, %s27
        %s283 = smul.u32 2, %s26
        %s284 = smul.u32 2, %s27
        %p285 = scmp.eq.s32.totalorder %s28, 0
        // Predicated region
        $region45: #{tpu_custom_call.1} parent=31 // pred_check
          %p286 = pneg %p285
        $region46: #{tpu_custom_call.1} parent=31 // pred_check_branch
          %288 = sbr.rel (%p286) target = $region48
        $region47: #{tpu_custom_call.1} parent=31 // pred_region
          %289 = vst [vmem:[#allocation2] sm:$0xff] 0.0
          %290 = vst [vmem:[#allocation2 + $0x8] sm:$0xff] 0.0
          %291 = vst [vmem:[#allocation2 + $0x10] sm:$0xff] 0.0
          %292 = vst [vmem:[#allocation2 + $0x18] sm:$0xff] 0.0
        $region48: #{tpu_custom_call.1} parent=31 // pred_fallthru
          _
        %v293 = vld [vmem:[#allocation2] sm:$0xff]
        %v294 = vld [vmem:[#allocation2 + $0x8] sm:$0xff]
        %v295 = vld [vmem:[#allocation2 + $0x10] sm:$0xff]
        %v296 = vld [vmem:[#allocation2 + $0x18] sm:$0xff]
        %v297 = vld [vmem:[#allocation3] sm:$0xff]
        %v298 = vld [vmem:[#allocation3 + $0x8] sm:$0xff]
        %v299 = vld [vmem:[#allocation3 + $0x10] sm:$0xff]
        %v300 = vld [vmem:[#allocation3 + $0x18] sm:$0xff]
        %v301 = vld [vmem:[#allocation3 + $0x20] sm:$0xff]
        %v302 = vld [vmem:[#allocation3 + $0x28] sm:$0xff]
        %v303 = vld [vmem:[#allocation3 + $0x30] sm:$0xff]
        %v304 = vld [vmem:[#allocation3 + $0x38] sm:$0xff]
        %v305 = vld [vmem:[%s241] sm:$0xff]
        %v306 = vld [vmem:[%s241 + $0x8] sm:$0xff]
        %v307 = vld [vmem:[%s241 + $0x10] sm:$0xff]
        %v308 = vld [vmem:[%s241 + $0x18] sm:$0xff]
        %v309 = vld [vmem:[%s241 + $0x20] sm:$0xff]
        %v310 = vld [vmem:[%s241 + $0x28] sm:$0xff]
        %v311 = vld [vmem:[%s241 + $0x30] sm:$0xff]
        %v312 = vld [vmem:[%s241 + $0x38] sm:$0xff]
        %v313 = vld [vmem:[%s241 + $0x40] sm:$0xff]
        %v314 = vld [vmem:[%s241 + $0x48] sm:$0xff]
        %v315 = vld [vmem:[%s241 + $0x50] sm:$0xff]
        %v316 = vld [vmem:[%s241 + $0x58] sm:$0xff]
        %v317 = vld [vmem:[%s241 + $0x60] sm:$0xff]
        %v318 = vld [vmem:[%s241 + $0x68] sm:$0xff]
        %v319 = vld [vmem:[%s241 + $0x70] sm:$0xff]
        %v320 = vld [vmem:[%s241 + $0x78] sm:$0xff]
        %v321 = vld [vmem:[%s241 + $0x80] sm:$0xff]
        %v322 = vld [vmem:[%s241 + $0x88] sm:$0xff]
        %v323 = vld [vmem:[%s241 + $0x90] sm:$0xff]
        %v324 = vld [vmem:[%s241 + $0x98] sm:$0xff]
        %v325 = vld [vmem:[%s241 + $0xa0] sm:$0xff]
        %v326 = vld [vmem:[%s241 + $0xa8] sm:$0xff]
        %v327 = vld [vmem:[%s241 + $0xb0] sm:$0xff]
        %v328 = vld [vmem:[%s241 + $0xb8] sm:$0xff]
        %v329 = vld [vmem:[%s241 + $0xc0] sm:$0xff]
        %v330 = vld [vmem:[%s241 + $0xc8] sm:$0xff]
        %v331 = vld [vmem:[%s241 + $0xd0] sm:$0xff]
        %v332 = vld [vmem:[%s241 + $0xd8] sm:$0xff]
        %v333 = vld [vmem:[%s241 + $0xe0] sm:$0xff]
        %v334 = vld [vmem:[%s241 + $0xe8] sm:$0xff]
        %v335 = vld [vmem:[%s241 + $0xf0] sm:$0xff]
        %v336 = vld [vmem:[%s241 + $0xf8] sm:$0xff]
        %v337 = vld [vmem:[%s241 + $0x100] sm:$0xff]
        %v338 = vld [vmem:[%s241 + $0x108] sm:$0xff]
        %v339 = vld [vmem:[%s241 + $0x110] sm:$0xff]
        %v340 = vld [vmem:[%s241 + $0x118] sm:$0xff]
        %v341 = vld [vmem:[%s241 + $0x120] sm:$0xff]
        %v342 = vld [vmem:[%s241 + $0x128] sm:$0xff]
        %v343 = vld [vmem:[%s241 + $0x130] sm:$0xff]
        %v344 = vld [vmem:[%s241 + $0x138] sm:$0xff]
        %v345 = vld [vmem:[%s241 + $0x140] sm:$0xff]
        %v346 = vld [vmem:[%s241 + $0x148] sm:$0xff]
        %v347 = vld [vmem:[%s241 + $0x150] sm:$0xff]
        %v348 = vld [vmem:[%s241 + $0x158] sm:$0xff]
        %v349 = vld [vmem:[%s241 + $0x160] sm:$0xff]
        %v350 = vld [vmem:[%s241 + $0x168] sm:$0xff]
        %v351 = vld [vmem:[%s241 + $0x170] sm:$0xff]
        %v352 = vld [vmem:[%s241 + $0x178] sm:$0xff]
        %v353 = vld [vmem:[%s241 + $0x180] sm:$0xff]
        %v354 = vld [vmem:[%s241 + $0x188] sm:$0xff]
        %v355 = vld [vmem:[%s241 + $0x190] sm:$0xff]
        %v356 = vld [vmem:[%s241 + $0x198] sm:$0xff]
        %v357 = vld [vmem:[%s241 + $0x1a0] sm:$0xff]
        %v358 = vld [vmem:[%s241 + $0x1a8] sm:$0xff]
        %v359 = vld [vmem:[%s241 + $0x1b0] sm:$0xff]
        %v360 = vld [vmem:[%s241 + $0x1b8] sm:$0xff]
        %v361 = vld [vmem:[%s241 + $0x1c0] sm:$0xff]
        %v362 = vld [vmem:[%s241 + $0x1c8] sm:$0xff]
        %v363 = vld [vmem:[%s241 + $0x1d0] sm:$0xff]
        %v364 = vld [vmem:[%s241 + $0x1d8] sm:$0xff]
        %v365 = vld [vmem:[%s241 + $0x1e0] sm:$0xff]
        %v366 = vld [vmem:[%s241 + $0x1e8] sm:$0xff]
        %v367 = vld [vmem:[%s241 + $0x1f0] sm:$0xff]
        %v368 = vld [vmem:[%s241 + $0x1f8] sm:$0xff]
        %v369 = vld [vmem:[%s241 + $0x200] sm:$0xff]
        %v370 = vld [vmem:[%s241 + $0x208] sm:$0xff]
        %v371 = vld [vmem:[%s241 + $0x210] sm:$0xff]
        %v372 = vld [vmem:[%s241 + $0x218] sm:$0xff]
        %v373 = vld [vmem:[%s241 + $0x220] sm:$0xff]
        %v374 = vld [vmem:[%s241 + $0x228] sm:$0xff]
        %v375 = vld [vmem:[%s241 + $0x230] sm:$0xff]
        %v376 = vld [vmem:[%s241 + $0x238] sm:$0xff]
        %v377 = vld [vmem:[%s241 + $0x240] sm:$0xff]
        %v378 = vld [vmem:[%s241 + $0x248] sm:$0xff]
        %v379 = vld [vmem:[%s241 + $0x250] sm:$0xff]
        %v380 = vld [vmem:[%s241 + $0x258] sm:$0xff]
        %v381 = vld [vmem:[%s241 + $0x260] sm:$0xff]
        %v382 = vld [vmem:[%s241 + $0x268] sm:$0xff]
        %v383 = vld [vmem:[%s241 + $0x270] sm:$0xff]
        %v384 = vld [vmem:[%s241 + $0x278] sm:$0xff]
        %v385 = vld [vmem:[%s241 + $0x280] sm:$0xff]
        %v386 = vld [vmem:[%s241 + $0x288] sm:$0xff]
        %v387 = vld [vmem:[%s241 + $0x290] sm:$0xff]
        %v388 = vld [vmem:[%s241 + $0x298] sm:$0xff]
        %v389 = vld [vmem:[%s241 + $0x2a0] sm:$0xff]
        %v390 = vld [vmem:[%s241 + $0x2a8] sm:$0xff]
        %v391 = vld [vmem:[%s241 + $0x2b0] sm:$0xff]
        %v392 = vld [vmem:[%s241 + $0x2b8] sm:$0xff]
        %v393 = vld [vmem:[%s241 + $0x2c0] sm:$0xff]
        %v394 = vld [vmem:[%s241 + $0x2c8] sm:$0xff]
        %v395 = vld [vmem:[%s241 + $0x2d0] sm:$0xff]
        %v396 = vld [vmem:[%s241 + $0x2d8] sm:$0xff]
        %v397 = vld [vmem:[%s241 + $0x2e0] sm:$0xff]
        %v398 = vld [vmem:[%s241 + $0x2e8] sm:$0xff]
        %v399 = vld [vmem:[%s241 + $0x2f0] sm:$0xff]
        %v400 = vld [vmem:[%s241 + $0x2f8] sm:$0xff]
        %v401 = vld [vmem:[%s241 + $0x300] sm:$0xff]
        %v402 = vld [vmem:[%s241 + $0x308] sm:$0xff]
        %v403 = vld [vmem:[%s241 + $0x310] sm:$0xff]
        %v404 = vld [vmem:[%s241 + $0x318] sm:$0xff]
        %v405 = vld [vmem:[%s241 + $0x320] sm:$0xff]
        %v406 = vld [vmem:[%s241 + $0x328] sm:$0xff]
        %v407 = vld [vmem:[%s241 + $0x330] sm:$0xff]
        %v408 = vld [vmem:[%s241 + $0x338] sm:$0xff]
        %v409 = vld [vmem:[%s241 + $0x340] sm:$0xff]
        %v410 = vld [vmem:[%s241 + $0x348] sm:$0xff]
        %v411 = vld [vmem:[%s241 + $0x350] sm:$0xff]
        %v412 = vld [vmem:[%s241 + $0x358] sm:$0xff]
        %v413 = vld [vmem:[%s241 + $0x360] sm:$0xff]
        %v414 = vld [vmem:[%s241 + $0x368] sm:$0xff]
        %v415 = vld [vmem:[%s241 + $0x370] sm:$0xff]
        %v416 = vld [vmem:[%s241 + $0x378] sm:$0xff]
        %v417 = vld [vmem:[%s241 + $0x380] sm:$0xff]
        %v418 = vld [vmem:[%s241 + $0x388] sm:$0xff]
        %v419 = vld [vmem:[%s241 + $0x390] sm:$0xff]
        %v420 = vld [vmem:[%s241 + $0x398] sm:$0xff]
        %v421 = vld [vmem:[%s241 + $0x3a0] sm:$0xff]
        %v422 = vld [vmem:[%s241 + $0x3a8] sm:$0xff]
        %v423 = vld [vmem:[%s241 + $0x3b0] sm:$0xff]
        %v424 = vld [vmem:[%s241 + $0x3b8] sm:$0xff]
        %v425 = vld [vmem:[%s241 + $0x3c0] sm:$0xff]
        %v426 = vld [vmem:[%s241 + $0x3c8] sm:$0xff]
        %v427 = vld [vmem:[%s241 + $0x3d0] sm:$0xff]
        %v428 = vld [vmem:[%s241 + $0x3d8] sm:$0xff]
        %v429 = vld [vmem:[%s241 + $0x3e0] sm:$0xff]
        %v430 = vld [vmem:[%s241 + $0x3e8] sm:$0xff]
        %v431 = vld [vmem:[%s241 + $0x3f0] sm:$0xff]
        %v432 = vld [vmem:[%s241 + $0x3f8] sm:$0xff]
        %433 = vmatprep.subr.mxu0 %v336
        %434 = vmatpush1.msra.mxu0 %v335
        %435 = vmatprep.subr.mxu0 %v334
        %436 = vmatpush1.msra.mxu0 %v333
        %437 = vmatprep.subr.mxu0 %v332
        %438 = vmatpush1.msra.mxu0 %v331
        %439 = vmatprep.subr.mxu0 %v330
        %440 = vmatpush1.msra.mxu0 %v329
        %441 = vmatprep.subr.mxu0 %v328
        %442 = vmatpush1.msra.mxu0 %v327
        %443 = vmatprep.subr.mxu0 %v326
        %444 = vmatpush1.msra.mxu0 %v325
        %445 = vmatprep.subr.mxu0 %v324
        %446 = vmatpush1.msra.mxu0 %v323
        %447 = vmatprep.subr.mxu0 %v322
        %448 = vmatpush1.msra.mxu0 %v321
        %449 = vmatprep.subr.mxu0 %v320
        %450 = vmatpush1.msra.mxu0 %v319
        %451 = vmatprep.subr.mxu0 %v318
        %452 = vmatpush1.msra.mxu0 %v317
        %453 = vmatprep.subr.mxu0 %v316
        %454 = vmatpush1.msra.mxu0 %v315
        %455 = vmatprep.subr.mxu0 %v314
        %456 = vmatpush1.msra.mxu0 %v313
        %457 = vmatprep.subr.mxu0 %v312
        %458 = vmatpush1.msra.mxu0 %v311
        %459 = vmatprep.subr.mxu0 %v310
        %460 = vmatpush1.msra.mxu0 %v309
        %461 = vmatprep.subr.mxu0 %v308
        %462 = vmatpush1.msra.mxu0 %v307
        %463 = vmatprep.subr.mxu0 %v306
        %464 = vmatpush1.msra.mxu0 %v305
        %465 = vmatprep.subr.mxu0 %v368
        %466 = vmatpush2.msra.mxu0 %v367
        %467 = vmatprep.subr.mxu0 %v366
        %468 = vmatpush2.msra.mxu0 %v365
        %469 = vmatprep.subr.mxu0 %v364
        %470 = vmatpush2.msra.mxu0 %v363
        %471 = vmatprep.subr.mxu0 %v362
        %472 = vmatpush2.msra.mxu0 %v361
        %473 = vmatprep.subr.mxu0 %v360
        %474 = vmatpush2.msra.mxu0 %v359
        %475 = vmatprep.subr.mxu0 %v358
        %476 = vmatpush2.msra.mxu0 %v357
        %477 = vmatprep.subr.mxu0 %v356
        %478 = vmatpush2.msra.mxu0 %v355
        %479 = vmatprep.subr.mxu0 %v354
        %480 = vmatpush2.msra.mxu0 %v353
        %481 = vmatprep.subr.mxu0 %v352
        %482 = vmatpush2.msra.mxu0 %v351
        %483 = vmatprep.subr.mxu0 %v350
        %484 = vmatpush2.msra.mxu0 %v349
        %485 = vmatprep.subr.mxu0 %v348
        %486 = vmatpush2.msra.mxu0 %v347
        %487 = vmatprep.subr.mxu0 %v346
        %488 = vmatpush2.msra.mxu0 %v345
        %489 = vmatprep.subr.mxu0 %v344
        %490 = vmatpush2.msra.mxu0 %v343
        %491 = vmatprep.subr.mxu0 %v342
        %492 = vmatpush2.msra.mxu0 %v341
        %493 = vmatprep.subr.mxu0 %v340
        %494 = vmatpush2.msra.mxu0 %v339
        %495 = vmatprep.subr.mxu0 %v338
        %496 = vmatpush2.msra.mxu0 %v337
        %497 = vmatprep.mubr.f32.mxu0 %v298
        %498 = vmatmul.mubr.f32.gmra.mxu0 %v297
        %v499 = vpop.f32.mrf.mxu0
        %v500 = vadd.f32 0.0, %v499
        %v501 = vpop.f32.mrf.mxu0
        %v502 = vadd.f32 0.0, %v501
        %503 = vmatprep.mubr.f32.mxu0 %v302
        %504 = vmatmul.mubr.f32.gmra.mxu0 %v301
        %v505 = vpop.f32.mrf.mxu0
        %v506 = vadd.f32 0.0, %v505
        %v507 = vpop.f32.mrf.mxu0
        %v508 = vadd.f32 0.0, %v507
        %509 = vdwg.mxu0
        %510 = vmatprep.subr.mxu0 %v400
        %511 = vmatpush1.msra.mxu0 %v399
        %512 = vmatprep.subr.mxu0 %v398
        %513 = vmatpush1.msra.mxu0 %v397
        %514 = vmatprep.subr.mxu0 %v396
        %515 = vmatpush1.msra.mxu0 %v395
        %516 = vmatprep.subr.mxu0 %v394
        %517 = vmatpush1.msra.mxu0 %v393
        %518 = vmatprep.subr.mxu0 %v392
        %519 = vmatpush1.msra.mxu0 %v391
        %520 = vmatprep.subr.mxu0 %v390
        %521 = vmatpush1.msra.mxu0 %v389
        %522 = vmatprep.subr.mxu0 %v388
        %523 = vmatpush1.msra.mxu0 %v387
        %524 = vmatprep.subr.mxu0 %v386
        %525 = vmatpush1.msra.mxu0 %v385
        %526 = vmatprep.subr.mxu0 %v384
        %527 = vmatpush1.msra.mxu0 %v383
        %528 = vmatprep.subr.mxu0 %v382
        %529 = vmatpush1.msra.mxu0 %v381
        %530 = vmatprep.subr.mxu0 %v380
        %531 = vmatpush1.msra.mxu0 %v379
        %532 = vmatprep.subr.mxu0 %v378
        %533 = vmatpush1.msra.mxu0 %v377
        %534 = vmatprep.subr.mxu0 %v376
        %535 = vmatpush1.msra.mxu0 %v375
        %536 = vmatprep.subr.mxu0 %v374
        %537 = vmatpush1.msra.mxu0 %v373
        %538 = vmatprep.subr.mxu0 %v372
        %539 = vmatpush1.msra.mxu0 %v371
        %540 = vmatprep.subr.mxu0 %v370
        %541 = vmatpush1.msra.mxu0 %v369
        %542 = vmatprep.subr.mxu0 %v432
        %543 = vmatpush2.msra.mxu0 %v431
        %544 = vmatprep.subr.mxu0 %v430
        %545 = vmatpush2.msra.mxu0 %v429
        %546 = vmatprep.subr.mxu0 %v428
        %547 = vmatpush2.msra.mxu0 %v427
        %548 = vmatprep.subr.mxu0 %v426
        %549 = vmatpush2.msra.mxu0 %v425
        %550 = vmatprep.subr.mxu0 %v424
        %551 = vmatpush2.msra.mxu0 %v423
        %552 = vmatprep.subr.mxu0 %v422
        %553 = vmatpush2.msra.mxu0 %v421
        %554 = vmatprep.subr.mxu0 %v420
        %555 = vmatpush2.msra.mxu0 %v419
        %556 = vmatprep.subr.mxu0 %v418
        %557 = vmatpush2.msra.mxu0 %v417
        %558 = vmatprep.subr.mxu0 %v416
        %559 = vmatpush2.msra.mxu0 %v415
        %560 = vmatprep.subr.mxu0 %v414
        %561 = vmatpush2.msra.mxu0 %v413
        %562 = vmatprep.subr.mxu0 %v412
        %563 = vmatpush2.msra.mxu0 %v411
        %564 = vmatprep.subr.mxu0 %v410
        %565 = vmatpush2.msra.mxu0 %v409
        %566 = vmatprep.subr.mxu0 %v408
        %567 = vmatpush2.msra.mxu0 %v407
        %568 = vmatprep.subr.mxu0 %v406
        %569 = vmatpush2.msra.mxu0 %v405
        %570 = vmatprep.subr.mxu0 %v404
        %571 = vmatpush2.msra.mxu0 %v403
        %572 = vmatprep.subr.mxu0 %v402
        %573 = vmatpush2.msra.mxu0 %v401
        %574 = vmatprep.mubr.f32.mxu0 %v300
        %575 = vmatmul.mubr.f32.gmra.mxu0 %v299
        %v576 = vpop.f32.mrf.mxu0
        %v577 = vadd.f32 %v500, %v576
        %v578 = vpop.f32.mrf.mxu0
        %v579 = vadd.f32 %v502, %v578
        %580 = vmatprep.mubr.f32.mxu0 %v304
        %581 = vmatmul.mubr.f32.gmra.mxu0 %v303
        %v582 = vpop.f32.mrf.mxu0
        %v583 = vadd.f32 %v506, %v582
        %v584 = vpop.f32.mrf.mxu0
        %v585 = vadd.f32 %v508, %v584
        %586 = vdwg.mxu0
        %v587 = vadd.f32 %v293, %v577
        %v588 = vadd.f32 %v294, %v579
        %v589 = vadd.f32 %v295, %v583
        %v590 = vadd.f32 %v296, %v585
        %591 = vst [vmem:[#allocation2] sm:$0xff] %v587
        %592 = vst [vmem:[#allocation2 + $0x8] sm:$0xff] %v588
        %593 = vst [vmem:[#allocation2 + $0x10] sm:$0xff] %v589
        %594 = vst [vmem:[#allocation2 + $0x18] sm:$0xff] %v590
        // Predicated region
        $region49: #{tpu_custom_call.1} parent=31 // pred_check
          %p595 = pneg %p285
        $region50: #{tpu_custom_call.1} parent=31 // pred_check_branch
          %597 = sbr.rel (%p595) target = $region52
        $region51: #{tpu_custom_call.1} parent=31 // pred_region
          %v598 = vld [vmem:[#allocation2] sm:$0xff]
          %v599 = vld [vmem:[#allocation2 + $0x8] sm:$0xff]
          %v600 = vld [vmem:[#allocation2 + $0x10] sm:$0xff]
          %v601 = vld [vmem:[#allocation2 + $0x18] sm:$0xff]
          %v602 = vld [vmem:[%s250] sm:$0x3]
          %v604 = vlaneseq
          %v605 = vshrl.u32 %v604, 7
          %v606 = vsub.s32 0, %v605
          %v607 = vrot.slane %v602, %v606
          %v608 = vlaneseq
          %v609 = vshrl.u32 %v608, 7
          %v610 = vsub.s32 1, %v609
          %v611 = vrot.slane %v602, %v610
          %v614 = vadd.f32 %v598, %v607
          %v615 = vadd.f32 %v599, %v611
          %v616 = vadd.f32 %v600, %v607
          %v617 = vadd.f32 %v601, %v611
          %618 = vst [vmem:[%s277] sm:$0xff] %v614
          %619 = vst [vmem:[%s277 + $0x8] sm:$0xff] %v615
          %620 = vst [vmem:[%s277 + $0x10] sm:$0xff] %v616
          %621 = vst [vmem:[%s277 + $0x18] sm:$0xff] %v617
        $region52: #{tpu_custom_call.1} parent=31 // pred_fallthru
          _
        %s622 = sand.u32 %s132, 1
        %s623 = scalar_lea.sflag [#allocation5], %s622
        %s624 = sand.u32 %s132, 1
        %s625 = smul.addr %s624, 32
        %s626 = scalar_lea.vmem [#allocation9], %s625
        // Predicated region
        $region53: #{tpu_custom_call.1} parent=31 // pred_check
          %p627 = pneg %p142
        $region54: #{tpu_custom_call.1} parent=31 // pred_check_branch
          %629 = sbr.rel (%p627) target = $region56
        $region55: #{tpu_custom_call.1} parent=31 // pred_region
          %s630 = smul.u32 2, %s26
          %s631 = smul.u32 2, %s27
          %s633 = ssub.s32 512, 512
          %634 = vsyncadd %s623, %s633
          %s635 = smul.addr %s630, 4
          %s636 = sadd.s32 %s631, %s635
          %s637 = smul.addr %s636, 128
          %s638 = scalar_lea.hbm %s3, %s637
          %s639 = sshll.u32 %s626, 4
          %s640 = int_to_ptr.vmem [resolvable:$true] %s639
          %645 = dma.vmem_to_hbm [thread:$0]  %s640, 512, %s638, %s623, 256, 512, 16
        $region56: #{tpu_custom_call.1} parent=31 // pred_fallthru
          _
      $region32: #{tpu_custom_call.1} parent=5 // pred_fallthru
        _
      %p646 = scmp.le.s32.totalorder 2, %s16
      // Predicated region
      $region57: #{tpu_custom_call.1} parent=5 // pred_check
        %p647 = pneg %p646
      $region58: #{tpu_custom_call.1} parent=5 // pred_check_branch
        %649 = sbr.rel (%p647) target = $region60
      $region59: #{tpu_custom_call.1} parent=5 // pred_region
        %s650 = ssub.s32 %s16, 2
        // Predicated region
        $region61: #{tpu_custom_call.1} parent=59 // pred_check
          %p651 = pneg %p148
        $region62: #{tpu_custom_call.1} parent=59 // pred_check_branch
          %653 = sbr.rel (%p651) target = $region64
        $region63: #{tpu_custom_call.1} parent=59 // pred_region
          %s654 = sand.u32 %s133, 1
          %s655 = scalar_lea.sflag [#allocation5], %s654
          %s656 = sand.u32 %s133, 1
          %s657 = smul.addr %s656, 32
          %s658 = scalar_lea.vmem [#allocation9], %s657
          %659 = dma.done %s655, 512
        $region64: #{tpu_custom_call.1} parent=59 // pred_fallthru
          _
      $region60: #{tpu_custom_call.1} parent=5 // pred_fallthru
        _
    $region6: #{tpu_custom_call.1} parent=1 // loop_footer
      %s20 = sadd.s32 1, %s16
    $region7: #{tpu_custom_call.1} parent=1 // loop_footer_branch
      %15 = sbr.rel target = $region3
    $region8: #{tpu_custom_call.1} parent=1 // loop_exit
      _
    %660 = vsyncpa [#allocation4], 1
    %s661 = scalar_lea.sflag [#allocation4], 1
    %662 = vsyncpa %s661, 1
    %663 = vsyncpa [#allocation7], 1
    %s664 = scalar_lea.sflag [#allocation7], 1
    %665 = vsyncpa %s664, 1
    %666 = vsyncpa [#allocation5], 1
    %s667 = scalar_lea.sflag [#allocation5], 1
    %668 = vsyncpa %s667, 1

</llo_original>
